<compile_context>
chip_gen: v7x
topology: tpu7x:2x2x1
jax: 0.10.0
libtpu: 0.0.40
codegen_flags: <defaults>
</compile_context>

<pallas_src>
import jax
import jax.numpy as jnp
import numpy as np
from jax import lax
from jax.experimental import pallas as pl
from jax.experimental.pallas import tpu as pltpu

TAU = 2.0
INV_TAU = 1.0 / TAU
V_TH = 1.0


# --------------------------- Pallas kernel ---------------------------------
def _smlp_kernel(x_ref, w1_ref, b1_ref, w2_ref, b2_ref, out_ref,
                 v1_ref, v2_ref, s1_ref, y1_ref, s2_ref):
    # x_ref / out_ref: (T, C, TN) slab — one batch element, one N tile.
    T, C, TN = x_ref.shape
    mm_dtype = w1_ref.dtype           # bf16 (production) or f32 (verification)

    # ---- stage 0: reset membrane state (scratch persists across grid steps)
    v1_ref[...] = jnp.zeros_like(v1_ref)
    v2_ref[...] = jnp.zeros_like(v2_ref)

    # ---- stage 1: LIF1 recurrence over T (pure VPU), spikes -> s1 scratch --
    # T is small and static; the per-iteration live state is one (C, TN) slab.
    for t in range(T):
        v1 = v1_ref[...]
        v1 = v1 + (x_ref[t] - v1) * INV_TAU          # charge (decay_input)
        fired = v1 >= V_TH
        s1_ref[:, t * TN:(t + 1) * TN] = fired.astype(mm_dtype)
        v1_ref[...] = jnp.where(fired, 0.0, v1)      # hard reset to 0

    # ---- stage 2: ONE matmul over all T*TN lanes, folded bias added once ---
    y1_ref[...] = (jnp.dot(w1_ref[...], s1_ref[...],
                           preferred_element_type=jnp.float32)
                   + b1_ref[...])                    # (Hdn, T*TN) f32

    # ---- stage 3: LIF2 recurrence over T --------------------------------
    for t in range(T):
        v2 = v2_ref[...]
        v2 = v2 + (y1_ref[:, t * TN:(t + 1) * TN] - v2) * INV_TAU
        fired = v2 >= V_TH
        s2_ref[:, t * TN:(t + 1) * TN] = fired.astype(mm_dtype)
        v2_ref[...] = jnp.where(fired, 0.0, v2)

    # ---- stage 4: ONE matmul + folded bias, scatter back per timestep -----
    y2 = (jnp.dot(w2_ref[...], s2_ref[...],
                  preferred_element_type=jnp.float32)
          + b2_ref[...])                             # (C, T*TN) f32
    for t in range(T):
        out_ref[t] = y2[:, t * TN:(t + 1) * TN].astype(out_ref.dtype)


# ------------------------------ wrapper -------------------------------------
def _pick_n_tile(n_pad, max_tile=1024):
    """Largest multiple of 128 that divides n_pad and is <= max_tile."""
    best = 128
    t = 128
    while t <= min(n_pad, max_tile):
        if n_pad % t == 0:
            best = t
        t += 128
    return best


def smlp_forward(x, params, *, matmul_dtype=jnp.bfloat16):
    """x: (T, B, C, H, W) float32 -> (T, B, C, H, W) float32."""
    T, B, C, H, W = x.shape
    N = H * W
    Hdn = params["w1"].shape[0]

    # Pad N up to a multiple of 128 so all loads/stores are lane-dense.
    N_pad = ((N + 127) // 128) * 128
    x_flat = x.reshape(T, B, C, N)
    if N_pad != N:
        x_flat = jnp.pad(x_flat, ((0, 0), (0, 0), (0, 0), (0, N_pad - N)))

    TN = _pick_n_tile(N_pad)
    n_tiles = N_pad // TN

    # Fold inference-mode BatchNorm (and the conv bias) into the weights:
    #   y = gamma/sqrt(var+eps) * (W s + b - mean) + beta  ==  W' s + b'
    eps = 1e-5
    sc1 = params["gamma1"] / jnp.sqrt(params["var1"] + eps)                   # (Hdn,)
    w1f = (params["w1"] * sc1[:, None]).astype(matmul_dtype)                  # (Hdn, C)
    b1f = (sc1 * (params["b1"] - params["mean1"])
           + params["beta1"]).reshape(Hdn, 1).astype(jnp.float32)
    sc2 = params["gamma2"] / jnp.sqrt(params["var2"] + eps)                   # (C,)
    w2f = (params["w2"] * sc2[:, None]).astype(matmul_dtype)                  # (C, Hdn)
    b2f = (sc2 * (params["b2"] - params["mean2"])
           + params["beta2"]).reshape(C, 1).astype(jnp.float32)

    out = pl.pallas_call(
        _smlp_kernel,
        out_shape=jax.ShapeDtypeStruct((T, B, C, N_pad), jnp.float32),
        grid_spec=pltpu.PrefetchScalarGridSpec(
            num_scalar_prefetch=0,
            grid=(B, n_tiles),      # both axes independent -> megacore shards them
            in_specs=[
                pl.BlockSpec((T, None, C, TN), lambda b, n: (0, b, 0, n)),  # x
                pl.BlockSpec((Hdn, C), lambda b, n: (0, 0)),                # w1 (BN folded)
                pl.BlockSpec((Hdn, 1), lambda b, n: (0, 0)),                # b1 (BN folded)
                pl.BlockSpec((C, Hdn), lambda b, n: (0, 0)),                # w2 (BN folded)
                pl.BlockSpec((C, 1), lambda b, n: (0, 0)),                  # b2 (BN folded)
            ],
            out_specs=pl.BlockSpec((T, None, C, TN), lambda b, n: (0, b, 0, n)),
            scratch_shapes=[
                pltpu.VMEM((C, TN), jnp.float32),         # v1 membrane
                pltpu.VMEM((Hdn, TN), jnp.float32),       # v2 membrane
                pltpu.VMEM((C, T * TN), matmul_dtype),    # s1 spikes (all t)
                pltpu.VMEM((Hdn, T * TN), jnp.float32),   # y1 = fc1+bn1 (all t)
                pltpu.VMEM((Hdn, T * TN), matmul_dtype),  # s2 spikes (all t)
            ],
        ),
        compiler_params=pltpu.CompilerParams(
            dimension_semantics=("parallel", "parallel")),
    )(x_flat, w1f, b1f, w2f, b2f)

    return out[..., :N].reshape(T, B, C, H, W)


# ---------------- pure-JAX reference (faithful, unfolded) -------------------
def _lif_ref(x):
    def step(v, xt):
        v = v + (xt - v) / TAU
        s = (v >= V_TH).astype(x.dtype)
        v = jnp.where(s > 0.0, 0.0, v)
        return v, s
    _, spikes = jax.lax.scan(step, jnp.zeros_like(x[0]), x)
    return spikes


def smlp_ref(x, params):
    T, B, C, H, W = x.shape
    N = H * W
    eps = 1e-5
    hi = lax.Precision.HIGHEST
    xf = x.reshape(T, B, C, N)
    s1 = _lif_ref(xf)
    y1 = (jnp.einsum("tbcn,hc->tbhn", s1, params["w1"], precision=hi)
          + params["b1"][None, None, :, None])
    y1 = ((y1 - params["mean1"][None, None, :, None])
          / jnp.sqrt(params["var1"][None, None, :, None] + eps)
          * params["gamma1"][None, None, :, None]
          + params["beta1"][None, None, :, None])
    s2 = _lif_ref(y1)
    y2 = (jnp.einsum("tbhn,ch->tbcn", s2, params["w2"], precision=hi)
          + params["b2"][None, None, :, None])
    y2 = ((y2 - params["mean2"][None, None, :, None])
          / jnp.sqrt(params["var2"][None, None, :, None] + eps)
          * params["gamma2"][None, None, :, None]
          + params["beta2"][None, None, :, None])
    return y2.reshape(T, B, C, H, W)


def _assert_mostly_close(a, b, rel_tol, max_bad_frac, name):
    # LIF thresholding is a discrete event: a rounding-level change in the
    # membrane potential can flip a (rare) near-threshold spike and perturb a
    # handful of outputs by O(weight).  So we check that the fraction of
    # mismatching elements is tiny rather than demanding elementwise allclose.
    err = np.abs(a - b) / (np.abs(b) + 1e-3)
    bad = float(np.mean(err > rel_tol))
    if not np.all(np.isfinite(a)):
        raise AssertionError(f"{name}: non-finite values in kernel output")
    if bad > max_bad_frac:
        raise AssertionError(
            f"{name}: {bad:.4%} of elements exceed rel_tol={rel_tol} "
            f"(max rel err {err.max():.3e})")


if __name__ == "__main__":
    T, B, C, Hdn, H, W = 4, 2, 8, 16, 8, 16   # N = H*W = 128 (lane aligned)

    key = jax.random.PRNGKey(0)
    ks = jax.random.split(key, 12)
    params = {
        "w1": jax.random.normal(ks[0], (Hdn, C), jnp.float32) * 0.3,
        "b1": jax.random.normal(ks[1], (Hdn,), jnp.float32) * 0.1,
        "gamma1": 1.0 + 0.1 * jax.random.normal(ks[2], (Hdn,), jnp.float32),
        "beta1": 0.1 * jax.random.normal(ks[3], (Hdn,), jnp.float32),
        "mean1": 0.1 * jax.random.normal(ks[4], (Hdn,), jnp.float32),
        "var1": 1.0 + 0.1 * jax.random.uniform(ks[5], (Hdn,), jnp.float32),
        "w2": jax.random.normal(ks[6], (C, Hdn), jnp.float32) * 0.3,
        "b2": jax.random.normal(ks[7], (C,), jnp.float32) * 0.1,
        "gamma2": 1.0 + 0.1 * jax.random.normal(ks[8], (C,), jnp.float32),
        "beta2": 0.1 * jax.random.normal(ks[9], (C,), jnp.float32),
        "mean2": 0.1 * jax.random.normal(ks[10], (C,), jnp.float32),
        "var2": 1.0 + 0.1 * jax.random.uniform(ks[11], (C,), jnp.float32),
    }

    x = jax.random.normal(jax.random.PRNGKey(42), (T, B, C, H, W), jnp.float32) * 1.5

    ref = np.asarray(jax.block_until_ready(smlp_ref(x, params)))

    # 1) f32 matmul path: tight check of the algorithm / staging.
    out_f32 = np.asarray(jax.block_until_ready(
        smlp_forward(x, params, matmul_dtype=jnp.float32)))
    _assert_mostly_close(out_f32, ref, rel_tol=1e-3, max_bad_frac=1e-3,
                         name="f32 path vs reference")

    # 2) bf16 matmul path (production): spikes are exact 0/1 in bf16; folded
    #    weight rounding gives ~0.4% rel error plus rare spike flips.
    out_bf16 = np.asarray(jax.block_until_ready(
        smlp_forward(x, params, matmul_dtype=jnp.bfloat16)))
    _assert_mostly_close(out_bf16, out_f32, rel_tol=5e-2, max_bad_frac=2e-2,
                         name="bf16 path vs f32 path")

    print("KERNEL_OK")
</pallas_src>

<mosaic_0001>
module attributes {stable_mosaic.version = 11 : i64} {
  func.func @_smlp_kernel(%arg0: i32, %arg1: i32, %arg2: memref<4x1x8x128xf32, #tpu.memory_space<vmem>>, %arg3: memref<16x8xf32, #tpu.memory_space<vmem>>, %arg4: memref<16x1xf32, #tpu.memory_space<vmem>>, %arg5: memref<8x16xf32, #tpu.memory_space<vmem>>, %arg6: memref<8x1xf32, #tpu.memory_space<vmem>>, %arg7: memref<4x1x8x128xf32, #tpu.memory_space<vmem>>, %arg8: memref<8x128xf32, #tpu.memory_space<vmem>>, %arg9: memref<16x128xf32, #tpu.memory_space<vmem>>, %arg10: memref<8x512xf32, #tpu.memory_space<vmem>>, %arg11: memref<16x512xf32, #tpu.memory_space<vmem>>, %arg12: memref<16x512xf32, #tpu.memory_space<vmem>>) attributes {dimension_semantics = [#tpu.dimension_semantics<parallel>, #tpu.dimension_semantics<parallel>], iteration_bounds = array<i64: 2, 1>, scalar_prefetch = 0 : i64, scratch_operands = 5 : i64, tpu.core_type = #tpu.core_type<tc>, window_params = [{transform_indices = @transform_0, window_bounds = array<i64: 4, 1, 8, 128>}, {pipeline_mode = #tpu.pipeline_mode<synchronous>, transform_indices = @transform_1, window_bounds = array<i64: 16, 8>}, {pipeline_mode = #tpu.pipeline_mode<synchronous>, transform_indices = @transform_2, window_bounds = array<i64: 16, 1>}, {pipeline_mode = #tpu.pipeline_mode<synchronous>, transform_indices = @transform_3, window_bounds = array<i64: 8, 16>}, {pipeline_mode = #tpu.pipeline_mode<synchronous>, transform_indices = @transform_4, window_bounds = array<i64: 8, 1>}, {transform_indices = @transform_5, window_bounds = array<i64: 4, 1, 8, 128>}]} {
    %cst = arith.constant 0.000000e+00 : f32
    %0 = vector.broadcast %cst : f32 to vector<8x128xf32>
    %c0 = arith.constant 0 : index
    %c0_0 = arith.constant 0 : index
    %1 = vector.load %arg8[%c0, %c0_0] : memref<8x128xf32, #tpu.memory_space<vmem>>, vector<8x128xf32>
    tpu.vector_store %arg8[%c0, %c0_0], %0 {strides = array<i32>} : memref<8x128xf32, #tpu.memory_space<vmem>>, vector<8x128xf32>,
    %cst_1 = arith.constant 0.000000e+00 : f32
    %2 = vector.broadcast %cst_1 : f32 to vector<16x128xf32>
    %c0_2 = arith.constant 0 : index
    %c0_3 = arith.constant 0 : index
    %3 = vector.load %arg9[%c0_2, %c0_3] : memref<16x128xf32, #tpu.memory_space<vmem>>, vector<16x128xf32>
    tpu.vector_store %arg9[%c0_2, %c0_3], %2 {strides = array<i32>} : memref<16x128xf32, #tpu.memory_space<vmem>>, vector<16x128xf32>,
    %c0_4 = arith.constant 0 : index
    %c0_5 = arith.constant 0 : index
    %4 = vector.load %arg8[%c0_4, %c0_5] : memref<8x128xf32, #tpu.memory_space<vmem>>, vector<8x128xf32>
    %c0_6 = arith.constant 0 : index
    %c0_7 = arith.constant 0 : index
    %c0_8 = arith.constant 0 : index
    %c0_9 = arith.constant 0 : index
    %5 = vector.load %arg2[%c0_6, %c0_7, %c0_8, %c0_9] : memref<4x1x8x128xf32, #tpu.memory_space<vmem>>, vector<1x1x8x128xf32>
    %6 = vector.shape_cast %5 : vector<1x1x8x128xf32> to vector<8x128xf32>
    %7 = arith.subf %6, %4 : vector<8x128xf32>
    %cst_10 = arith.constant 5.000000e-01 : f32
    %8 = vector.broadcast %cst_10 : f32 to vector<8x128xf32>
    %9 = arith.mulf %7, %8 : vector<8x128xf32>
    %10 = arith.addf %4, %9 : vector<8x128xf32>
    %cst_11 = arith.constant 1.000000e+00 : f32
    %11 = vector.broadcast %cst_11 : f32 to vector<8x128xf32>
    %12 = arith.cmpf oge, %10, %11 : vector<8x128xf32>
    %13 = arith.extui %12 : vector<8x128xi1> to vector<8x128xi32>
    %14 = arith.sitofp %13 : vector<8x128xi32> to vector<8x128xf32>
    %c0_12 = arith.constant 0 : index
    %c0_13 = arith.constant 0 : index
    %15 = vector.load %arg10[%c0_12, %c0_13] : memref<8x512xf32, #tpu.memory_space<vmem>>, vector<8x128xf32>
    tpu.vector_store %arg10[%c0_12, %c0_13], %14 {strides = array<i32>} : memref<8x512xf32, #tpu.memory_space<vmem>>, vector<8x128xf32>,
    %cst_14 = arith.constant 0.000000e+00 : f32
    %16 = vector.broadcast %cst_14 : f32 to vector<8x128xf32>
    %17 = arith.select %12, %16, %10 : vector<8x128xi1>, vector<8x128xf32>
    %c0_15 = arith.constant 0 : index
    %c0_16 = arith.constant 0 : index
    %18 = vector.load %arg8[%c0_15, %c0_16] : memref<8x128xf32, #tpu.memory_space<vmem>>, vector<8x128xf32>
    tpu.vector_store %arg8[%c0_15, %c0_16], %17 {strides = array<i32>} : memref<8x128xf32, #tpu.memory_space<vmem>>, vector<8x128xf32>,
    %c0_17 = arith.constant 0 : index
    %c0_18 = arith.constant 0 : index
    %19 = vector.load %arg8[%c0_17, %c0_18] : memref<8x128xf32, #tpu.memory_space<vmem>>, vector<8x128xf32>
    %c1 = arith.constant 1 : index
    %c0_19 = arith.constant 0 : index
    %c0_20 = arith.constant 0 : index
    %c0_21 = arith.constant 0 : index
    %20 = vector.load %arg2[%c1, %c0_19, %c0_20, %c0_21] : memref<4x1x8x128xf32, #tpu.memory_space<vmem>>, vector<1x1x8x128xf32>
    %21 = vector.shape_cast %20 : vector<1x1x8x128xf32> to vector<8x128xf32>
    %22 = arith.subf %21, %19 : vector<8x128xf32>
    %cst_22 = arith.constant 5.000000e-01 : f32
    %23 = vector.broadcast %cst_22 : f32 to vector<8x128xf32>
    %24 = arith.mulf %22, %23 : vector<8x128xf32>
    %25 = arith.addf %19, %24 : vector<8x128xf32>
    %cst_23 = arith.constant 1.000000e+00 : f32
    %26 = vector.broadcast %cst_23 : f32 to vector<8x128xf32>
    %27 = arith.cmpf oge, %25, %26 : vector<8x128xf32>
    %28 = arith.extui %27 : vector<8x128xi1> to vector<8x128xi32>
    %29 = arith.sitofp %28 : vector<8x128xi32> to vector<8x128xf32>
    %c0_24 = arith.constant 0 : index
    %c128 = arith.constant 128 : index
    %30 = vector.load %arg10[%c0_24, %c128] : memref<8x512xf32, #tpu.memory_space<vmem>>, vector<8x128xf32>
    tpu.vector_store %arg10[%c0_24, %c128], %29 {strides = array<i32>} : memref<8x512xf32, #tpu.memory_space<vmem>>, vector<8x128xf32>,
    %cst_25 = arith.constant 0.000000e+00 : f32
    %31 = vector.broadcast %cst_25 : f32 to vector<8x128xf32>
    %32 = arith.select %27, %31, %25 : vector<8x128xi1>, vector<8x128xf32>
    %c0_26 = arith.constant 0 : index
    %c0_27 = arith.constant 0 : index
    %33 = vector.load %arg8[%c0_26, %c0_27] : memref<8x128xf32, #tpu.memory_space<vmem>>, vector<8x128xf32>
    tpu.vector_store %arg8[%c0_26, %c0_27], %32 {strides = array<i32>} : memref<8x128xf32, #tpu.memory_space<vmem>>, vector<8x128xf32>,
    %c0_28 = arith.constant 0 : index
    %c0_29 = arith.constant 0 : index
    %34 = vector.load %arg8[%c0_28, %c0_29] : memref<8x128xf32, #tpu.memory_space<vmem>>, vector<8x128xf32>
    %c2 = arith.constant 2 : index
    %c0_30 = arith.constant 0 : index
    %c0_31 = arith.constant 0 : index
    %c0_32 = arith.constant 0 : index
    %35 = vector.load %arg2[%c2, %c0_30, %c0_31, %c0_32] : memref<4x1x8x128xf32, #tpu.memory_space<vmem>>, vector<1x1x8x128xf32>
    %36 = vector.shape_cast %35 : vector<1x1x8x128xf32> to vector<8x128xf32>
    %37 = arith.subf %36, %34 : vector<8x128xf32>
    %cst_33 = arith.constant 5.000000e-01 : f32
    %38 = vector.broadcast %cst_33 : f32 to vector<8x128xf32>
    %39 = arith.mulf %37, %38 : vector<8x128xf32>
    %40 = arith.addf %34, %39 : vector<8x128xf32>
    %cst_34 = arith.constant 1.000000e+00 : f32
    %41 = vector.broadcast %cst_34 : f32 to vector<8x128xf32>
    %42 = arith.cmpf oge, %40, %41 : vector<8x128xf32>
    %43 = arith.extui %42 : vector<8x128xi1> to vector<8x128xi32>
    %44 = arith.sitofp %43 : vector<8x128xi32> to vector<8x128xf32>
    %c0_35 = arith.constant 0 : index
    %c256 = arith.constant 256 : index
    %45 = vector.load %arg10[%c0_35, %c256] : memref<8x512xf32, #tpu.memory_space<vmem>>, vector<8x128xf32>
    tpu.vector_store %arg10[%c0_35, %c256], %44 {strides = array<i32>} : memref<8x512xf32, #tpu.memory_space<vmem>>, vector<8x128xf32>,
    %cst_36 = arith.constant 0.000000e+00 : f32
    %46 = vector.broadcast %cst_36 : f32 to vector<8x128xf32>
    %47 = arith.select %42, %46, %40 : vector<8x128xi1>, vector<8x128xf32>
    %c0_37 = arith.constant 0 : index
    %c0_38 = arith.constant 0 : index
    %48 = vector.load %arg8[%c0_37, %c0_38] : memref<8x128xf32, #tpu.memory_space<vmem>>, vector<8x128xf32>
    tpu.vector_store %arg8[%c0_37, %c0_38], %47 {strides = array<i32>} : memref<8x128xf32, #tpu.memory_space<vmem>>, vector<8x128xf32>,
    %c0_39 = arith.constant 0 : index
    %c0_40 = arith.constant 0 : index
    %49 = vector.load %arg8[%c0_39, %c0_40] : memref<8x128xf32, #tpu.memory_space<vmem>>, vector<8x128xf32>
    %c3 = arith.constant 3 : index
    %c0_41 = arith.constant 0 : index
    %c0_42 = arith.constant 0 : index
    %c0_43 = arith.constant 0 : index
    %50 = vector.load %arg2[%c3, %c0_41, %c0_42, %c0_43] : memref<4x1x8x128xf32, #tpu.memory_space<vmem>>, vector<1x1x8x128xf32>
    %51 = vector.shape_cast %50 : vector<1x1x8x128xf32> to vector<8x128xf32>
    %52 = arith.subf %51, %49 : vector<8x128xf32>
    %cst_44 = arith.constant 5.000000e-01 : f32
    %53 = vector.broadcast %cst_44 : f32 to vector<8x128xf32>
    %54 = arith.mulf %52, %53 : vector<8x128xf32>
    %55 = arith.addf %49, %54 : vector<8x128xf32>
    %cst_45 = arith.constant 1.000000e+00 : f32
    %56 = vector.broadcast %cst_45 : f32 to vector<8x128xf32>
    %57 = arith.cmpf oge, %55, %56 : vector<8x128xf32>
    %58 = arith.extui %57 : vector<8x128xi1> to vector<8x128xi32>
    %59 = arith.sitofp %58 : vector<8x128xi32> to vector<8x128xf32>
    %c0_46 = arith.constant 0 : index
    %c384 = arith.constant 384 : index
    %60 = vector.load %arg10[%c0_46, %c384] : memref<8x512xf32, #tpu.memory_space<vmem>>, vector<8x128xf32>
    tpu.vector_store %arg10[%c0_46, %c384], %59 {strides = array<i32>} : memref<8x512xf32, #tpu.memory_space<vmem>>, vector<8x128xf32>,
    %cst_47 = arith.constant 0.000000e+00 : f32
    %61 = vector.broadcast %cst_47 : f32 to vector<8x128xf32>
    %62 = arith.select %57, %61, %55 : vector<8x128xi1>, vector<8x128xf32>
    %c0_48 = arith.constant 0 : index
    %c0_49 = arith.constant 0 : index
    %63 = vector.load %arg8[%c0_48, %c0_49] : memref<8x128xf32, #tpu.memory_space<vmem>>, vector<8x128xf32>
    tpu.vector_store %arg8[%c0_48, %c0_49], %62 {strides = array<i32>} : memref<8x128xf32, #tpu.memory_space<vmem>>, vector<8x128xf32>,
    %c0_50 = arith.constant 0 : index
    %c0_51 = arith.constant 0 : index
    %64 = vector.load %arg3[%c0_50, %c0_51] : memref<16x8xf32, #tpu.memory_space<vmem>>, vector<16x8xf32>
    %c0_52 = arith.constant 0 : index
    %c0_53 = arith.constant 0 : index
    %65 = vector.load %arg10[%c0_52, %c0_53] : memref<8x512xf32, #tpu.memory_space<vmem>>, vector<8x512xf32>
    %cst_54 = arith.constant dense<0.000000e+00> : vector<16x512xf32>
    %66 = tpu.matmul %64, %65, %cst_54 {dimension_numbers = #tpu.dot_dimension_numbers<[1], [0], [0], [1], [0, 0, 1, 1], [], []>} : vector<16x8xf32>, vector<8x512xf32>, vector<16x512xf32> -> vector<16x512xf32>
    %c0_55 = arith.constant 0 : index
    %c0_56 = arith.constant 0 : index
    %67 = vector.load %arg4[%c0_55, %c0_56] : memref<16x1xf32, #tpu.memory_space<vmem>>, vector<16x1xf32>
    %68 = vector.broadcast %67 : vector<16x1xf32> to vector<16x512xf32>
    %69 = arith.addf %66, %68 : vector<16x512xf32>
    %c0_57 = arith.constant 0 : index
    %c0_58 = arith.constant 0 : index
    %70 = vector.load %arg11[%c0_57, %c0_58] : memref<16x512xf32, #tpu.memory_space<vmem>>, vector<16x512xf32>
    tpu.vector_store %arg11[%c0_57, %c0_58], %69 {strides = array<i32>} : memref<16x512xf32, #tpu.memory_space<vmem>>, vector<16x512xf32>,
    %c0_59 = arith.constant 0 : index
    %c0_60 = arith.constant 0 : index
    %71 = vector.load %arg9[%c0_59, %c0_60] : memref<16x128xf32, #tpu.memory_space<vmem>>, vector<16x128xf32>
    %c0_61 = arith.constant 0 : index
    %c0_62 = arith.constant 0 : index
    %72 = vector.load %arg11[%c0_61, %c0_62] : memref<16x512xf32, #tpu.memory_space<vmem>>, vector<16x128xf32>
    %73 = arith.subf %72, %71 : vector<16x128xf32>
    %cst_63 = arith.constant 5.000000e-01 : f32
    %74 = vector.broadcast %cst_63 : f32 to vector<16x128xf32>
    %75 = arith.mulf %73, %74 : vector<16x128xf32>
    %76 = arith.addf %71, %75 : vector<16x128xf32>
    %cst_64 = arith.constant 1.000000e+00 : f32
    %77 = vector.broadcast %cst_64 : f32 to vector<16x128xf32>
    %78 = arith.cmpf oge, %76, %77 : vector<16x128xf32>
    %79 = arith.extui %78 : vector<16x128xi1> to vector<16x128xi32>
    %80 = arith.sitofp %79 : vector<16x128xi32> to vector<16x128xf32>
    %c0_65 = arith.constant 0 : index
    %c0_66 = arith.constant 0 : index
    %81 = vector.load %arg12[%c0_65, %c0_66] : memref<16x512xf32, #tpu.memory_space<vmem>>, vector<16x128xf32>
    tpu.vector_store %arg12[%c0_65, %c0_66], %80 {strides = array<i32>} : memref<16x512xf32, #tpu.memory_space<vmem>>, vector<16x128xf32>,
    %cst_67 = arith.constant 0.000000e+00 : f32
    %82 = vector.broadcast %cst_67 : f32 to vector<16x128xf32>
    %83 = arith.select %78, %82, %76 : vector<16x128xi1>, vector<16x128xf32>
    %c0_68 = arith.constant 0 : index
    %c0_69 = arith.constant 0 : index
    %84 = vector.load %arg9[%c0_68, %c0_69] : memref<16x128xf32, #tpu.memory_space<vmem>>, vector<16x128xf32>
    tpu.vector_store %arg9[%c0_68, %c0_69], %83 {strides = array<i32>} : memref<16x128xf32, #tpu.memory_space<vmem>>, vector<16x128xf32>,
    %c0_70 = arith.constant 0 : index
    %c0_71 = arith.constant 0 : index
    %85 = vector.load %arg9[%c0_70, %c0_71] : memref<16x128xf32, #tpu.memory_space<vmem>>, vector<16x128xf32>
    %c0_72 = arith.constant 0 : index
    %c128_73 = arith.constant 128 : index
    %86 = vector.load %arg11[%c0_72, %c128_73] : memref<16x512xf32, #tpu.memory_space<vmem>>, vector<16x128xf32>
    %87 = arith.subf %86, %85 : vector<16x128xf32>
    %cst_74 = arith.constant 5.000000e-01 : f32
    %88 = vector.broadcast %cst_74 : f32 to vector<16x128xf32>
    %89 = arith.mulf %87, %88 : vector<16x128xf32>
    %90 = arith.addf %85, %89 : vector<16x128xf32>
    %cst_75 = arith.constant 1.000000e+00 : f32
    %91 = vector.broadcast %cst_75 : f32 to vector<16x128xf32>
    %92 = arith.cmpf oge, %90, %91 : vector<16x128xf32>
    %93 = arith.extui %92 : vector<16x128xi1> to vector<16x128xi32>
    %94 = arith.sitofp %93 : vector<16x128xi32> to vector<16x128xf32>
    %c0_76 = arith.constant 0 : index
    %c128_77 = arith.constant 128 : index
    %95 = vector.load %arg12[%c0_76, %c128_77] : memref<16x512xf32, #tpu.memory_space<vmem>>, vector<16x128xf32>
    tpu.vector_store %arg12[%c0_76, %c128_77], %94 {strides = array<i32>} : memref<16x512xf32, #tpu.memory_space<vmem>>, vector<16x128xf32>,
    %cst_78 = arith.constant 0.000000e+00 : f32
    %96 = vector.broadcast %cst_78 : f32 to vector<16x128xf32>
    %97 = arith.select %92, %96, %90 : vector<16x128xi1>, vector<16x128xf32>
    %c0_79 = arith.constant 0 : index
    %c0_80 = arith.constant 0 : index
    %98 = vector.load %arg9[%c0_79, %c0_80] : memref<16x128xf32, #tpu.memory_space<vmem>>, vector<16x128xf32>
    tpu.vector_store %arg9[%c0_79, %c0_80], %97 {strides = array<i32>} : memref<16x128xf32, #tpu.memory_space<vmem>>, vector<16x128xf32>,
    %c0_81 = arith.constant 0 : index
    %c0_82 = arith.constant 0 : index
    %99 = vector.load %arg9[%c0_81, %c0_82] : memref<16x128xf32, #tpu.memory_space<vmem>>, vector<16x128xf32>
    %c0_83 = arith.constant 0 : index
    %c256_84 = arith.constant 256 : index
    %100 = vector.load %arg11[%c0_83, %c256_84] : memref<16x512xf32, #tpu.memory_space<vmem>>, vector<16x128xf32>
    %101 = arith.subf %100, %99 : vector<16x128xf32>
    %cst_85 = arith.constant 5.000000e-01 : f32
    %102 = vector.broadcast %cst_85 : f32 to vector<16x128xf32>
    %103 = arith.mulf %101, %102 : vector<16x128xf32>
    %104 = arith.addf %99, %103 : vector<16x128xf32>
    %cst_86 = arith.constant 1.000000e+00 : f32
    %105 = vector.broadcast %cst_86 : f32 to vector<16x128xf32>
    %106 = arith.cmpf oge, %104, %105 : vector<16x128xf32>
    %107 = arith.extui %106 : vector<16x128xi1> to vector<16x128xi32>
    %108 = arith.sitofp %107 : vector<16x128xi32> to vector<16x128xf32>
    %c0_87 = arith.constant 0 : index
    %c256_88 = arith.constant 256 : index
    %109 = vector.load %arg12[%c0_87, %c256_88] : memref<16x512xf32, #tpu.memory_space<vmem>>, vector<16x128xf32>
    tpu.vector_store %arg12[%c0_87, %c256_88], %108 {strides = array<i32>} : memref<16x512xf32, #tpu.memory_space<vmem>>, vector<16x128xf32>,
    %cst_89 = arith.constant 0.000000e+00 : f32
    %110 = vector.broadcast %cst_89 : f32 to vector<16x128xf32>
    %111 = arith.select %106, %110, %104 : vector<16x128xi1>, vector<16x128xf32>
    %c0_90 = arith.constant 0 : index
    %c0_91 = arith.constant 0 : index
    %112 = vector.load %arg9[%c0_90, %c0_91] : memref<16x128xf32, #tpu.memory_space<vmem>>, vector<16x128xf32>
    tpu.vector_store %arg9[%c0_90, %c0_91], %111 {strides = array<i32>} : memref<16x128xf32, #tpu.memory_space<vmem>>, vector<16x128xf32>,
    %c0_92 = arith.constant 0 : index
    %c0_93 = arith.constant 0 : index
    %113 = vector.load %arg9[%c0_92, %c0_93] : memref<16x128xf32, #tpu.memory_space<vmem>>, vector<16x128xf32>
    %c0_94 = arith.constant 0 : index
    %c384_95 = arith.constant 384 : index
    %114 = vector.load %arg11[%c0_94, %c384_95] : memref<16x512xf32, #tpu.memory_space<vmem>>, vector<16x128xf32>
    %115 = arith.subf %114, %113 : vector<16x128xf32>
    %cst_96 = arith.constant 5.000000e-01 : f32
    %116 = vector.broadcast %cst_96 : f32 to vector<16x128xf32>
    %117 = arith.mulf %115, %116 : vector<16x128xf32>
    %118 = arith.addf %113, %117 : vector<16x128xf32>
    %cst_97 = arith.constant 1.000000e+00 : f32
    %119 = vector.broadcast %cst_97 : f32 to vector<16x128xf32>
    %120 = arith.cmpf oge, %118, %119 : vector<16x128xf32>
    %121 = arith.extui %120 : vector<16x128xi1> to vector<16x128xi32>
    %122 = arith.sitofp %121 : vector<16x128xi32> to vector<16x128xf32>
    %c0_98 = arith.constant 0 : index
    %c384_99 = arith.constant 384 : index
    %123 = vector.load %arg12[%c0_98, %c384_99] : memref<16x512xf32, #tpu.memory_space<vmem>>, vector<16x128xf32>
    tpu.vector_store %arg12[%c0_98, %c384_99], %122 {strides = array<i32>} : memref<16x512xf32, #tpu.memory_space<vmem>>, vector<16x128xf32>,
    %cst_100 = arith.constant 0.000000e+00 : f32
    %124 = vector.broadcast %cst_100 : f32 to vector<16x128xf32>
    %125 = arith.select %120, %124, %118 : vector<16x128xi1>, vector<16x128xf32>
    %c0_101 = arith.constant 0 : index
    %c0_102 = arith.constant 0 : index
    %126 = vector.load %arg9[%c0_101, %c0_102] : memref<16x128xf32, #tpu.memory_space<vmem>>, vector<16x128xf32>
    tpu.vector_store %arg9[%c0_101, %c0_102], %125 {strides = array<i32>} : memref<16x128xf32, #tpu.memory_space<vmem>>, vector<16x128xf32>,
    %c0_103 = arith.constant 0 : index
    %c0_104 = arith.constant 0 : index
    %127 = vector.load %arg5[%c0_103, %c0_104] : memref<8x16xf32, #tpu.memory_space<vmem>>, vector<8x16xf32>
    %c0_105 = arith.constant 0 : index
    %c0_106 = arith.constant 0 : index
    %128 = vector.load %arg12[%c0_105, %c0_106] : memref<16x512xf32, #tpu.memory_space<vmem>>, vector<16x512xf32>
    %cst_107 = arith.constant dense<0.000000e+00> : vector<8x512xf32>
    %129 = tpu.matmul %127, %128, %cst_107 {dimension_numbers = #tpu.dot_dimension_numbers<[1], [0], [0], [1], [0, 0, 1, 1], [], []>} : vector<8x16xf32>, vector<16x512xf32>, vector<8x512xf32> -> vector<8x512xf32>
    %c0_108 = arith.constant 0 : index
    %c0_109 = arith.constant 0 : index
    %130 = vector.load %arg6[%c0_108, %c0_109] : memref<8x1xf32, #tpu.memory_space<vmem>>, vector<8x1xf32>
    %131 = vector.broadcast %130 : vector<8x1xf32> to vector<8x512xf32>
    %132 = arith.addf %129, %131 : vector<8x512xf32>
    %133 = vector.extract_strided_slice %132 {offsets = [0, 0], sizes = [8, 128], strides = [1, 1]} : vector<8x512xf32> to vector<8x128xf32>
    %c0_110 = arith.constant 0 : index
    %c0_111 = arith.constant 0 : index
    %c0_112 = arith.constant 0 : index
    %c0_113 = arith.constant 0 : index
    %134 = vector.load %arg7[%c0_110, %c0_111, %c0_112, %c0_113] : memref<4x1x8x128xf32, #tpu.memory_space<vmem>>, vector<1x1x8x128xf32>
    %135 = vector.shape_cast %134 : vector<1x1x8x128xf32> to vector<8x128xf32>
    %136 = vector.shape_cast %133 : vector<8x128xf32> to vector<1x1x8x128xf32>
    tpu.vector_store %arg7[%c0_110, %c0_111, %c0_112, %c0_113], %136 {strides = array<i32>} : memref<4x1x8x128xf32, #tpu.memory_space<vmem>>, vector<1x1x8x128xf32>,
    %137 = vector.extract_strided_slice %132 {offsets = [0, 128], sizes = [8, 128], strides = [1, 1]} : vector<8x512xf32> to vector<8x128xf32>
    %c1_114 = arith.constant 1 : index
    %c0_115 = arith.constant 0 : index
    %c0_116 = arith.constant 0 : index
    %c0_117 = arith.constant 0 : index
    %138 = vector.load %arg7[%c1_114, %c0_115, %c0_116, %c0_117] : memref<4x1x8x128xf32, #tpu.memory_space<vmem>>, vector<1x1x8x128xf32>
    %139 = vector.shape_cast %138 : vector<1x1x8x128xf32> to vector<8x128xf32>
    %140 = vector.shape_cast %137 : vector<8x128xf32> to vector<1x1x8x128xf32>
    tpu.vector_store %arg7[%c1_114, %c0_115, %c0_116, %c0_117], %140 {strides = array<i32>} : memref<4x1x8x128xf32, #tpu.memory_space<vmem>>, vector<1x1x8x128xf32>,
    %141 = vector.extract_strided_slice %132 {offsets = [0, 256], sizes = [8, 128], strides = [1, 1]} : vector<8x512xf32> to vector<8x128xf32>
    %c2_118 = arith.constant 2 : index
    %c0_119 = arith.constant 0 : index
    %c0_120 = arith.constant 0 : index
    %c0_121 = arith.constant 0 : index
    %142 = vector.load %arg7[%c2_118, %c0_119, %c0_120, %c0_121] : memref<4x1x8x128xf32, #tpu.memory_space<vmem>>, vector<1x1x8x128xf32>
    %143 = vector.shape_cast %142 : vector<1x1x8x128xf32> to vector<8x128xf32>
    %144 = vector.shape_cast %141 : vector<8x128xf32> to vector<1x1x8x128xf32>
    tpu.vector_store %arg7[%c2_118, %c0_119, %c0_120, %c0_121], %144 {strides = array<i32>} : memref<4x1x8x128xf32, #tpu.memory_space<vmem>>, vector<1x1x8x128xf32>,
    %145 = vector.extract_strided_slice %132 {offsets = [0, 384], sizes = [8, 128], strides = [1, 1]} : vector<8x512xf32> to vector<8x128xf32>
    %c3_122 = arith.constant 3 : index
    %c0_123 = arith.constant 0 : index
    %c0_124 = arith.constant 0 : index
    %c0_125 = arith.constant 0 : index
    %146 = vector.load %arg7[%c3_122, %c0_123, %c0_124, %c0_125] : memref<4x1x8x128xf32, #tpu.memory_space<vmem>>, vector<1x1x8x128xf32>
    %147 = vector.shape_cast %146 : vector<1x1x8x128xf32> to vector<8x128xf32>
    %148 = vector.shape_cast %145 : vector<8x128xf32> to vector<1x1x8x128xf32>
    tpu.vector_store %arg7[%c3_122, %c0_123, %c0_124, %c0_125], %148 {strides = array<i32>} : memref<4x1x8x128xf32, #tpu.memory_space<vmem>>, vector<1x1x8x128xf32>,
    return
  }
  func.func @transform_0(%arg0: i32, %arg1: i32) -> (i32, i32, i32, i32) {
    %c0_i32 = arith.constant 0 : i32
    %c0_i32_0 = arith.constant 0 : i32
    %c0_i32_1 = arith.constant 0 : i32
    return %c0_i32, %arg0, %c0_i32_0, %arg1 : i32, i32, i32, i32
  }
  func.func @transform_1(%arg0: i32, %arg1: i32) -> (i32, i32) {
    %c0_i32 = arith.constant 0 : i32
    %c0_i32_0 = arith.constant 0 : i32
    %c0_i32_1 = arith.constant 0 : i32
    return %c0_i32, %c0_i32_0 : i32, i32
  }
  func.func @transform_2(%arg0: i32, %arg1: i32) -> (i32, i32) {
    %c0_i32 = arith.constant 0 : i32
    %c0_i32_0 = arith.constant 0 : i32
    %c0_i32_1 = arith.constant 0 : i32
    return %c0_i32, %c0_i32_0 : i32, i32
  }
  func.func @transform_3(%arg0: i32, %arg1: i32) -> (i32, i32) {
    %c0_i32 = arith.constant 0 : i32
    %c0_i32_0 = arith.constant 0 : i32
    %c0_i32_1 = arith.constant 0 : i32
    return %c0_i32, %c0_i32_0 : i32, i32
  }
  func.func @transform_4(%arg0: i32, %arg1: i32) -> (i32, i32) {
    %c0_i32 = arith.constant 0 : i32
    %c0_i32_0 = arith.constant 0 : i32
    %c0_i32_1 = arith.constant 0 : i32
    return %c0_i32, %c0_i32_0 : i32, i32
  }
  func.func @transform_5(%arg0: i32, %arg1: i32) -> (i32, i32, i32, i32) {
    %c0_i32 = arith.constant 0 : i32
    %c0_i32_0 = arith.constant 0 : i32
    %c0_i32_1 = arith.constant 0 : i32
    return %c0_i32, %arg0, %c0_i32_0, %arg1 : i32, i32, i32, i32
  }
}

</mosaic_0001>

<llo_original>
// kernel: tpu_custom_call.1
$region0: #{tpu_custom_call.1}
  #allocation0 [shape = 'u32[]', space=smem, size = 0x4, offset = 0x4, fixed_abs, tag = 'smem constant byte address 0x4 - core index']
  #allocation1 [shape = 'u32[144,128]{1,0:T(1,128)}', space=vmem, size = 0x12000, scoped, tag = 'internal scratch']
  #allocation2 [shape = 'f32[8,128]{1,0:T(8,128)}', space=vmem, size = 0x1000, scoped, tag = 'scratch operand']
  #allocation3 [shape = 'f32[16,128]{1,0:T(8,128)}', space=vmem, size = 0x2000, scoped, tag = 'scratch operand']
  #allocation4 [shape = 'f32[8,512]{1,0:T(8,128)}', space=vmem, size = 0x4000, scoped, tag = 'scratch operand']
  #allocation5 [shape = 'f32[16,512]{1,0:T(8,128)}', space=vmem, size = 0x8000, scoped, tag = 'scratch operand']
  #allocation6 [shape = 'f32[16,512]{1,0:T(8,128)}', space=vmem, size = 0x8000, scoped, tag = 'scratch operand']
  %s0 = inlined_call_operand.hbm [shape: f32[4,2,8,128], index: 0, kind: input, shape index: {}]
  %s1 = inlined_call_operand.vmem [shape: f32[16,8], index: 1, kind: input, shape index: {}]
  %s2 = inlined_call_operand.vmem [shape: f32[16,1], index: 2, kind: input, shape index: {}]
  %s3 = inlined_call_operand.vmem [shape: f32[8,16], index: 3, kind: input, shape index: {}]
  %s4 = inlined_call_operand.vmem [shape: f32[8,1], index: 4, kind: input, shape index: {}]
  %s5 = inlined_call_operand.hbm [shape: f32[4,2,8,128], index: 5, kind: output, shape index: {}]
  %s6 = sld [smem:[#allocation0]]
  $region57: #{tpu_custom_call.1} parent=0
    _
  %s8 = ssub.s32 1, %s6
  %s9 = scalar_select 0, %s8, %s6
  $region1: #{tpu_custom_call.1} parent=0
    #allocation7 [shape = 'u8[32768]{0}', space=vmem, size = 0x8000, scoped, tag = 'input window, operand 0']
    #allocation8 [shape = 's32[2]{0}', space=sflag, size = 0x8, scoped, tag = 'scoped memory for tpu_custom_call.1']
    #allocation9 [shape = 's32[2]{0}', space=sflag, size = 0x8, scoped, tag = 'scoped memory for tpu_custom_call.1']
    #allocation10 [shape = 'u8[32768]{0}', space=vmem, size = 0x8000, scoped, tag = 'output window, operand 0']
    %10 = vsyncpa [#allocation8], 0
    %s11 = scalar_lea.sflag [#allocation8], 1
    %12 = vsyncpa %s11, 0
    %13 = vsyncpa [#allocation9], 0
    %s14 = scalar_lea.sflag [#allocation9], 1
    %15 = vsyncpa %s14, 0
    loop: start=0, step=1, limit=4
    $region2: #{tpu_custom_call.1} parent=1 // loop_pre_header
      _
    $region3: #{tpu_custom_call.1} parent=1 // loop_header
      %s17 = sphi 0, %s21
      %p18 = scmp.ge.s32.totalorder %s17, 4
      %s24 = sphi 0, %s36
      %s25 = sphi 0, %s32
      %s26 = sphi 0, %s24
      %s27 = sphi 0, %s25
      %s28 = sphi 0, %s26
      %s29 = sphi 0, %s27
      %s41 = sphi 0, %s43
      %s44 = sphi 0, %s41
      %s45 = sphi 0, %s44
      %s61 = sphi 0, %s45
      %s65 = sphi 0, %s65
      %s67 = sphi 0, %s65
      %s68 = sphi 0, %s67
      %s82 = sphi 0, %s68
      %s86 = sphi 0, %s86
      %s88 = sphi 0, %s86
      %s89 = sphi 0, %s88
      %s103 = sphi 0, %s89
      %s107 = sphi 0, %s107
      %s109 = sphi 0, %s107
      %s110 = sphi 0, %s109
      %s124 = sphi 0, %s110
      %s128 = sphi 0, %s128
      %s130 = sphi 0, %s128
      %s131 = sphi 0, %s130
      %s145 = sphi 0, %s131
      %s153 = sphi 0, %s155
      %s156 = sphi 0, %s153
      %s157 = sphi 0, %s156
      %s173 = sphi 0, %s157
    $region4: #{tpu_custom_call.1} parent=1 // loop_header_branch
      %20 = sbr.rel (%p18) target = $region8
    $region5: #{tpu_custom_call.1} parent=1 // loop_body
      %s22 = ssub.s32 %s17, 1
      %s23 = ssub.s32 %s17, 2
      %s30 = sadd.s32 1, %s25
      %p31 = scmp.ge.s32.totalorder %s30, 1
      %s32 = scalar_select %p31, 0, %s30
      %s33 = sadd.s32 1, %s24
      %s34 = scalar_select %p31, %s33, %s24
      %p35 = scmp.ge.s32.totalorder %s34, 2
      %s36 = scalar_select %p35, 0, %s34
      %s37 = ssub.s32 %s24, %s36
      %s38 = ssub.s32 %s25, %s32
      %s39 = sor.u32 %s37, %s38
      %p40 = scmp.eq.s32.totalorder %s39, 0
      %s42 = sadd.s32 %s41, 1
      %s43 = scalar_select %p40, %s41, %s42
      %p46 = pneg %p40
      %p47 = scmp.eq.s32.totalorder %s17, 1
      %p48 = por %p46, %p47
      %p49 = scmp.ne.s32.totalorder %s41, %s44
      %p50 = scmp.eq.s32.totalorder %s17, 0
      %p51 = por %p49, %p50
      %p52 = scmp.ne.s32.totalorder %s41, %s44
      %p53 = scmp.eq.s32.totalorder %s22, 1
      %p54 = por %p52, %p53
      %p55 = scmp.ne.s32.totalorder %s44, %s45
      %p56 = scmp.eq.s32.totalorder %s22, 0
      %p57 = por %p55, %p56
      %p58 = scmp.ne.s32.totalorder %s44, %s45
      %p59 = scmp.eq.s32.totalorder %s23, 1
      %p60 = por %p58, %p59
      %p62 = scmp.ne.s32.totalorder %s45, %s61
      %p63 = scmp.eq.s32.totalorder %s23, 0
      %p64 = por %p62, %p63
      %s66 = sadd.s32 %s65, 1
      %p69 = scmp.eq.s32.totalorder %s17, 1
      %p70 = scmp.ne.s32.totalorder %s65, %s67
      %p71 = scmp.eq.s32.totalorder %s17, 0
      %p72 = por %p70, %p71
      %p73 = scmp.ne.s32.totalorder %s65, %s67
      %p74 = scmp.eq.s32.totalorder %s22, 1
      %p75 = por %p73, %p74
      %p76 = scmp.ne.s32.totalorder %s67, %s68
      %p77 = scmp.eq.s32.totalorder %s22, 0
      %p78 = por %p76, %p77
      %p79 = scmp.ne.s32.totalorder %s67, %s68
      %p80 = scmp.eq.s32.totalorder %s23, 1
      %p81 = por %p79, %p80
      %p83 = scmp.ne.s32.totalorder %s68, %s82
      %p84 = scmp.eq.s32.totalorder %s23, 0
      %p85 = por %p83, %p84
      %s87 = sadd.s32 %s86, 1
      %p90 = scmp.eq.s32.totalorder %s17, 1
      %p91 = scmp.ne.s32.totalorder %s86, %s88
      %p92 = scmp.eq.s32.totalorder %s17, 0
      %p93 = por %p91, %p92
      %p94 = scmp.ne.s32.totalorder %s86, %s88
      %p95 = scmp.eq.s32.totalorder %s22, 1
      %p96 = por %p94, %p95
      %p97 = scmp.ne.s32.totalorder %s88, %s89
      %p98 = scmp.eq.s32.totalorder %s22, 0
      %p99 = por %p97, %p98
      %p100 = scmp.ne.s32.totalorder %s88, %s89
      %p101 = scmp.eq.s32.totalorder %s23, 1
      %p102 = por %p100, %p101
      %p104 = scmp.ne.s32.totalorder %s89, %s103
      %p105 = scmp.eq.s32.totalorder %s23, 0
      %p106 = por %p104, %p105
      %s108 = sadd.s32 %s107, 1
      %p111 = scmp.eq.s32.totalorder %s17, 1
      %p112 = scmp.ne.s32.totalorder %s107, %s109
      %p113 = scmp.eq.s32.totalorder %s17, 0
      %p114 = por %p112, %p113
      %p115 = scmp.ne.s32.totalorder %s107, %s109
      %p116 = scmp.eq.s32.totalorder %s22, 1
      %p117 = por %p115, %p116
      %p118 = scmp.ne.s32.totalorder %s109, %s110
      %p119 = scmp.eq.s32.totalorder %s22, 0
      %p120 = por %p118, %p119
      %p121 = scmp.ne.s32.totalorder %s109, %s110
      %p122 = scmp.eq.s32.totalorder %s23, 1
      %p123 = por %p121, %p122
      %p125 = scmp.ne.s32.totalorder %s110, %s124
      %p126 = scmp.eq.s32.totalorder %s23, 0
      %p127 = por %p125, %p126
      %s129 = sadd.s32 %s128, 1
      %p132 = scmp.eq.s32.totalorder %s17, 1
      %p133 = scmp.ne.s32.totalorder %s128, %s130
      %p134 = scmp.eq.s32.totalorder %s17, 0
      %p135 = por %p133, %p134
      %p136 = scmp.ne.s32.totalorder %s128, %s130
      %p137 = scmp.eq.s32.totalorder %s22, 1
      %p138 = por %p136, %p137
      %p139 = scmp.ne.s32.totalorder %s130, %s131
      %p140 = scmp.eq.s32.totalorder %s22, 0
      %p141 = por %p139, %p140
      %p142 = scmp.ne.s32.totalorder %s130, %s131
      %p143 = scmp.eq.s32.totalorder %s23, 1
      %p144 = por %p142, %p143
      %p146 = scmp.ne.s32.totalorder %s131, %s145
      %p147 = scmp.eq.s32.totalorder %s23, 0
      %p148 = por %p146, %p147
      %s149 = ssub.s32 %s24, %s36
      %s150 = ssub.s32 %s25, %s32
      %s151 = sor.u32 %s149, %s150
      %p152 = scmp.eq.s32.totalorder %s151, 0
      %s154 = sadd.s32 %s153, 1
      %s155 = scalar_select %p152, %s153, %s154
      %p158 = pneg %p152
      %p159 = scmp.eq.s32.totalorder %s17, 1
      %p160 = por %p158, %p159
      %p161 = scmp.ne.s32.totalorder %s153, %s156
      %p162 = scmp.eq.s32.totalorder %s17, 0
      %p163 = por %p161, %p162
      %p164 = scmp.ne.s32.totalorder %s153, %s156
      %p165 = scmp.eq.s32.totalorder %s22, 1
      %p166 = por %p164, %p165
      %p167 = scmp.ne.s32.totalorder %s156, %s157
      %p168 = scmp.eq.s32.totalorder %s22, 0
      %p169 = por %p167, %p168
      %p170 = scmp.ne.s32.totalorder %s156, %s157
      %p171 = scmp.eq.s32.totalorder %s23, 1
      %p172 = por %p170, %p171
      %p174 = scmp.ne.s32.totalorder %s157, %s173
      %p175 = scmp.eq.s32.totalorder %s23, 0
      %p176 = por %p174, %p175
      %p177 = scmp.le.s32.totalorder 1, %s17
      %p178 = scmp.lt.s32.totalorder %s17, 3
      %p179 = pnand %p177, %p178
      %p180 = pneg %p179
      // Predicated region
      $region9: #{tpu_custom_call.1} parent=5 // pred_check
        _
      $region10: #{tpu_custom_call.1} parent=5 // pred_check_branch
        %182 = sbr.rel (%p179) target = $region12
      $region11: #{tpu_custom_call.1} parent=5 // pred_region
        %s183 = ssub.s32 %s17, 1
        // Predicated region
        $region13: #{tpu_custom_call.1} parent=11 // pred_check
          %p184 = pneg %p78
        $region14: #{tpu_custom_call.1} parent=11 // pred_check_branch
          %186 = sbr.rel (%p184) target = $region16
        $region15: #{tpu_custom_call.1} parent=11 // pred_region
          _
        $region16: #{tpu_custom_call.1} parent=11 // pred_fallthru
          _
        // Predicated region
        $region17: #{tpu_custom_call.1} parent=11 // pred_check
          %p187 = pneg %p99
        $region18: #{tpu_custom_call.1} parent=11 // pred_check_branch
          %189 = sbr.rel (%p187) target = $region20
        $region19: #{tpu_custom_call.1} parent=11 // pred_region
          _
        $region20: #{tpu_custom_call.1} parent=11 // pred_fallthru
          _
        // Predicated region
        $region21: #{tpu_custom_call.1} parent=11 // pred_check
          %p190 = pneg %p120
        $region22: #{tpu_custom_call.1} parent=11 // pred_check_branch
          %192 = sbr.rel (%p190) target = $region24
        $region23: #{tpu_custom_call.1} parent=11 // pred_region
          _
        $region24: #{tpu_custom_call.1} parent=11 // pred_fallthru
          _
        // Predicated region
        $region25: #{tpu_custom_call.1} parent=11 // pred_check
          %p193 = pneg %p141
        $region26: #{tpu_custom_call.1} parent=11 // pred_check_branch
          %195 = sbr.rel (%p193) target = $region28
        $region27: #{tpu_custom_call.1} parent=11 // pred_region
          _
        $region28: #{tpu_custom_call.1} parent=11 // pred_fallthru
          _
      $region12: #{tpu_custom_call.1} parent=5 // pred_fallthru
        _
      %p196 = scmp.lt.s32.totalorder %s17, 2
      // Predicated region
      $region29: #{tpu_custom_call.1} parent=5 // pred_check
        %p197 = pneg %p196
      $region30: #{tpu_custom_call.1} parent=5 // pred_check_branch
        %199 = sbr.rel (%p197) target = $region32
      $region31: #{tpu_custom_call.1} parent=5 // pred_region
        // Predicated region
        $region33: #{tpu_custom_call.1} parent=31 // pred_check
          %p200 = pneg %p51
        $region34: #{tpu_custom_call.1} parent=31 // pred_check_branch
          %202 = sbr.rel (%p200) target = $region36
        $region35: #{tpu_custom_call.1} parent=31 // pred_region
          %s203 = sand.u32 %s41, 1
          %s204 = scalar_lea.sflag [#allocation8], %s203
          %s205 = sand.u32 %s41, 1
          %s206 = smul.addr %s205, 32
          %s207 = scalar_lea.vmem [#allocation7], %s206
          %s209 = ssub.s32 512, 512
          %210 = vsyncadd %s204, %s209
          %s211 = sadd.s32 %s25, %s24
          %s212 = smul.addr %s211, 128
          %s213 = scalar_lea.hbm %s0, %s212
          %s214 = sshll.u32 %s207, 4
          %s215 = int_to_ptr.vmem [resolvable:$true] %s214
          %220 = dma.hbm_to_vmem [thread:$0]  %s213, 512, %s215, %s204, 256, 128, 8
        $region36: #{tpu_custom_call.1} parent=31 // pred_fallthru
          _
      $region32: #{tpu_custom_call.1} parent=5 // pred_fallthru
        _
      %p221 = scmp.le.s32.totalorder 1, %s17
      %p222 = scmp.lt.s32.totalorder %s17, 3
      %p223 = pnand %p221, %p222
      %p224 = pneg %p223
      // Predicated region
      $region37: #{tpu_custom_call.1} parent=5 // pred_check
        _
      $region38: #{tpu_custom_call.1} parent=5 // pred_check_branch
        %226 = sbr.rel (%p223) target = $region40
      $region39: #{tpu_custom_call.1} parent=5 // pred_region
        %s227 = ssub.s32 %s17, 1
        %s228 = sand.u32 %s44, 1
        %s229 = scalar_lea.sflag [#allocation8], %s228
        %s230 = sand.u32 %s44, 1
        %s231 = smul.addr %s230, 32
        %s232 = scalar_lea.vmem [#allocation7], %s231
        // Predicated region
        $region41: #{tpu_custom_call.1} parent=39 // pred_check
          %p233 = pneg %p57
        $region42: #{tpu_custom_call.1} parent=39 // pred_check_branch
          %235 = sbr.rel (%p233) target = $region44
        $region43: #{tpu_custom_call.1} parent=39 // pred_region
          %236 = dma.done %s229, 512
        $region44: #{tpu_custom_call.1} parent=39 // pred_fallthru
          _
        %s237 = sand.u32 %s44, 1
        %s238 = scalar_lea.sflag [#allocation8], %s237
        %s239 = sand.u32 %s44, 1
        %s240 = smul.addr %s239, 32
        %s241 = scalar_lea.vmem [#allocation7], %s240
        %p242 = pneg %p57
        %p243 = pneg %p54
        %p244 = pneg %p78
        %p245 = pneg %p75
        %p246 = pneg %p99
        %p247 = pneg %p96
        %p248 = pneg %p120
        %p249 = pneg %p117
        %p250 = pneg %p141
        %p251 = pneg %p138
        %p252 = pneg %p169
        %p253 = pneg %p166
        %s254 = sand.u32 %s156, 1
        %s255 = scalar_lea.sflag [#allocation9], %s254
        %s256 = sand.u32 %s156, 1
        %s257 = smul.addr %s256, 32
        %s258 = scalar_lea.vmem [#allocation10], %s257
        %259 = vst [vmem:[#allocation2] sm:$0xff] 0.0
        %260 = vst [vmem:[#allocation3] sm:$0xff] 0.0
        %261 = vst [vmem:[#allocation3 + $0x8] sm:$0xff] 0.0
        %v262 = vld [vmem:[#allocation2] sm:$0xff]
        %v263 = vld [vmem:[%s232] sm:$0xff]
        %v264 = vsub.f32 %v263, %v262
        %v265 = vmul.f32 %v264, 0.5
        %v266 = vadd.f32 %v262, %v265
        %vm267 = vcmp.ge.f32.partialorder %v266, 1.0
        %v268 = vsel %vm267, 1, 0
        %v269 = vcvt.s32.f32 %v268
        %270 = vst [vmem:[#allocation4] sm:$0xff] %v269
        %v271 = vsel %vm267, 0.0, %v266
        %272 = vst [vmem:[#allocation2] sm:$0xff] %v271
        %v273 = vld [vmem:[#allocation2] sm:$0xff]
        %s274 = scalar_lea.vmem %s232, 8 [#allocation7]
        %v275 = vld [vmem:[%s274] sm:$0xff]
        %v276 = vsub.f32 %v275, %v273
        %v277 = vmul.f32 %v276, 0.5
        %v278 = vadd.f32 %v273, %v277
        %vm279 = vcmp.ge.f32.partialorder %v278, 1.0
        %v280 = vsel %vm279, 1, 0
        %v281 = vcvt.s32.f32 %v280
        %282 = vst [vmem:[#allocation4 + $0x8] sm:$0xff] %v281
        %v283 = vsel %vm279, 0.0, %v278
        %284 = vst [vmem:[#allocation2] sm:$0xff] %v283
        %v285 = vld [vmem:[#allocation2] sm:$0xff]
        %s286 = scalar_lea.vmem %s232, 16 [#allocation7]
        %v287 = vld [vmem:[%s286] sm:$0xff]
        %v288 = vsub.f32 %v287, %v285
        %v289 = vmul.f32 %v288, 0.5
        %v290 = vadd.f32 %v285, %v289
        %vm291 = vcmp.ge.f32.partialorder %v290, 1.0
        %v292 = vsel %vm291, 1, 0
        %v293 = vcvt.s32.f32 %v292
        %294 = vst [vmem:[#allocation4 + $0x10] sm:$0xff] %v293
        %v295 = vsel %vm291, 0.0, %v290
        %296 = vst [vmem:[#allocation2] sm:$0xff] %v295
        %v297 = vld [vmem:[#allocation2] sm:$0xff]
        %s298 = scalar_lea.vmem %s232, 24 [#allocation7]
        %v299 = vld [vmem:[%s298] sm:$0xff]
        %v300 = vsub.f32 %v299, %v297
        %v301 = vmul.f32 %v300, 0.5
        %v302 = vadd.f32 %v297, %v301
        %vm303 = vcmp.ge.f32.partialorder %v302, 1.0
        %v304 = vsel %vm303, 1, 0
        %v305 = vcvt.s32.f32 %v304
        %306 = vst [vmem:[#allocation4 + $0x18] sm:$0xff] %v305
        %v307 = vsel %vm303, 0.0, %v302
        %308 = vst [vmem:[#allocation2] sm:$0xff] %v307
        %v309 = vld [vmem:[%s1] sm:$0xff]
        %v310 = vld [vmem:[%s1 + $0x8] sm:$0xff]
        %v311 = vld [vmem:[#allocation4] sm:$0xff]
        %v312 = vld [vmem:[#allocation4 + $0x8] sm:$0xff]
        %v313 = vld [vmem:[#allocation4 + $0x10] sm:$0xff]
        %v314 = vld [vmem:[#allocation4 + $0x18] sm:$0xff]
        %v315 = vld [vmem:[%s2] sm:$0xff]
        %v316 = vld [vmem:[%s2 + $0x8] sm:$0xff]
        %318 = vset.pattern.permute.xlu0 0
        %319 = vperm.xlu0 %318, %v315
        %v320 = vpop.permute.xlu0 %319
        %323 = vset.pattern.permute.xlu0 0
        %324 = vperm.xlu0 %323, %v316
        %v325 = vpop.permute.xlu0 %324
        %vm327 = vcmask 64512
        %v329 = vsel %vm327, %v309, 0
        %v332 = vsel %vm327, %v310, 0
        %334 = vmatprep.subr.mxu0 %v312
        %335 = vmatpush1.msra.mxu0 %v311
        %336 = vmatprep.subr.mxu0 0.0
        %337 = vmatpush1.msra.mxu0 0.0
        %338 = vmatprep.subr.mxu0 0.0
        %339 = vmatpush1.msra.mxu0 0.0
        %340 = vmatprep.subr.mxu0 0.0
        %341 = vmatpush1.msra.mxu0 0.0
        %342 = vmatprep.subr.mxu0 0.0
        %343 = vmatpush1.msra.mxu0 0.0
        %344 = vmatprep.subr.mxu0 0.0
        %345 = vmatpush1.msra.mxu0 0.0
        %346 = vmatprep.subr.mxu0 0.0
        %347 = vmatpush1.msra.mxu0 0.0
        %348 = vmatprep.subr.mxu0 0.0
        %349 = vmatpush1.msra.mxu0 0.0
        %350 = vmatprep.subr.mxu0 0.0
        %351 = vmatpush1.msra.mxu0 0.0
        %352 = vmatprep.subr.mxu0 0.0
        %353 = vmatpush1.msra.mxu0 0.0
        %354 = vmatprep.subr.mxu0 0.0
        %355 = vmatpush1.msra.mxu0 0.0
        %356 = vmatprep.subr.mxu0 0.0
        %357 = vmatpush1.msra.mxu0 0.0
        %358 = vmatprep.subr.mxu0 0.0
        %359 = vmatpush1.msra.mxu0 0.0
        %360 = vmatprep.subr.mxu0 0.0
        %361 = vmatpush1.msra.mxu0 0.0
        %362 = vmatprep.subr.mxu0 0.0
        %363 = vmatpush1.msra.mxu0 0.0
        %364 = vmatprep.subr.mxu0 0.0
        %365 = vmatpush1.msra.mxu0 0.0
        %366 = vmatprep.subr.mxu0 0.0
        %367 = vmatpush1.msra.mxu0 0.0
        %368 = vmatprep.subr.mxu0 0.0
        %369 = vmatpush1.msra.mxu0 0.0
        %370 = vmatprep.subr.mxu0 0.0
        %371 = vmatpush1.msra.mxu0 0.0
        %372 = vmatprep.subr.mxu0 0.0
        %373 = vmatpush1.msra.mxu0 0.0
        %374 = vmatprep.subr.mxu0 0.0
        %375 = vmatpush1.msra.mxu0 0.0
        %376 = vmatprep.subr.mxu0 0.0
        %377 = vmatpush1.msra.mxu0 0.0
        %378 = vmatprep.subr.mxu0 0.0
        %379 = vmatpush1.msra.mxu0 0.0
        %380 = vmatprep.subr.mxu0 0.0
        %381 = vmatpush1.msra.mxu0 0.0
        %382 = vmatprep.subr.mxu0 0.0
        %383 = vmatpush1.msra.mxu0 0.0
        %384 = vmatprep.subr.mxu0 0.0
        %385 = vmatpush1.msra.mxu0 0.0
        %386 = vmatprep.subr.mxu0 0.0
        %387 = vmatpush1.msra.mxu0 0.0
        %388 = vmatprep.subr.mxu0 0.0
        %389 = vmatpush1.msra.mxu0 0.0
        %390 = vmatprep.subr.mxu0 0.0
        %391 = vmatpush1.msra.mxu0 0.0
        %392 = vmatprep.subr.mxu0 0.0
        %393 = vmatpush1.msra.mxu0 0.0
        %394 = vmatprep.subr.mxu0 0.0
        %395 = vmatpush1.msra.mxu0 0.0
        %396 = vmatprep.subr.mxu0 0.0
        %397 = vmatpush1.msra.mxu0 0.0
        %398 = vmatprep.mubr.f32.mxu0 0.0
        %399 = vmatmul.mubr.f32.gmra.mrb[0].mxu0 %v329
        %v400 = vpop.f32.mrb[0].mxu0
        %v401 = vadd.f32 %v320, %v400
        %v402 = vpop.f32.mrb[0].mxu0
        %v403 = vadd.f32 %v320, %v402
        %404 = vmatprep.mubr.f32.mxu0 0.0
        %405 = vmatmul.mubr.f32.gmra.mrb[0].mxu0 %v332
        %v406 = vpop.f32.mrb[0].mxu0
        %v407 = vadd.f32 %v325, %v406
        %v408 = vpop.f32.mrb[0].mxu0
        %v409 = vadd.f32 %v325, %v408
        %410 = vdwg.mxu0
        %411 = vmatprep.subr.mxu0 %v314
        %412 = vmatpush1.msra.mxu0 %v313
        %413 = vmatprep.subr.mxu0 0.0
        %414 = vmatpush1.msra.mxu0 0.0
        %415 = vmatprep.subr.mxu0 0.0
        %416 = vmatpush1.msra.mxu0 0.0
        %417 = vmatprep.subr.mxu0 0.0
        %418 = vmatpush1.msra.mxu0 0.0
        %419 = vmatprep.subr.mxu0 0.0
        %420 = vmatpush1.msra.mxu0 0.0
        %421 = vmatprep.subr.mxu0 0.0
        %422 = vmatpush1.msra.mxu0 0.0
        %423 = vmatprep.subr.mxu0 0.0
        %424 = vmatpush1.msra.mxu0 0.0
        %425 = vmatprep.subr.mxu0 0.0
        %426 = vmatpush1.msra.mxu0 0.0
        %427 = vmatprep.subr.mxu0 0.0
        %428 = vmatpush1.msra.mxu0 0.0
        %429 = vmatprep.subr.mxu0 0.0
        %430 = vmatpush1.msra.mxu0 0.0
        %431 = vmatprep.subr.mxu0 0.0
        %432 = vmatpush1.msra.mxu0 0.0
        %433 = vmatprep.subr.mxu0 0.0
        %434 = vmatpush1.msra.mxu0 0.0
        %435 = vmatprep.subr.mxu0 0.0
        %436 = vmatpush1.msra.mxu0 0.0
        %437 = vmatprep.subr.mxu0 0.0
        %438 = vmatpush1.msra.mxu0 0.0
        %439 = vmatprep.subr.mxu0 0.0
        %440 = vmatpush1.msra.mxu0 0.0
        %441 = vmatprep.subr.mxu0 0.0
        %442 = vmatpush1.msra.mxu0 0.0
        %443 = vmatprep.subr.mxu0 0.0
        %444 = vmatpush1.msra.mxu0 0.0
        %445 = vmatprep.subr.mxu0 0.0
        %446 = vmatpush1.msra.mxu0 0.0
        %447 = vmatprep.subr.mxu0 0.0
        %448 = vmatpush1.msra.mxu0 0.0
        %449 = vmatprep.subr.mxu0 0.0
        %450 = vmatpush1.msra.mxu0 0.0
        %451 = vmatprep.subr.mxu0 0.0
        %452 = vmatpush1.msra.mxu0 0.0
        %453 = vmatprep.subr.mxu0 0.0
        %454 = vmatpush1.msra.mxu0 0.0
        %455 = vmatprep.subr.mxu0 0.0
        %456 = vmatpush1.msra.mxu0 0.0
        %457 = vmatprep.subr.mxu0 0.0
        %458 = vmatpush1.msra.mxu0 0.0
        %459 = vmatprep.subr.mxu0 0.0
        %460 = vmatpush1.msra.mxu0 0.0
        %461 = vmatprep.subr.mxu0 0.0
        %462 = vmatpush1.msra.mxu0 0.0
        %463 = vmatprep.subr.mxu0 0.0
        %464 = vmatpush1.msra.mxu0 0.0
        %465 = vmatprep.subr.mxu0 0.0
        %466 = vmatpush1.msra.mxu0 0.0
        %467 = vmatprep.subr.mxu0 0.0
        %468 = vmatpush1.msra.mxu0 0.0
        %469 = vmatprep.subr.mxu0 0.0
        %470 = vmatpush1.msra.mxu0 0.0
        %471 = vmatprep.subr.mxu0 0.0
        %472 = vmatpush1.msra.mxu0 0.0
        %473 = vmatprep.subr.mxu0 0.0
        %474 = vmatpush1.msra.mxu0 0.0
        %475 = vmatprep.mubr.f32.mxu0 0.0
        %476 = vmatmul.mubr.f32.gmra.mrb[0].mxu0 %v329
        %v477 = vpop.f32.mrb[0].mxu0
        %v478 = vadd.f32 %v320, %v477
        %v479 = vpop.f32.mrb[0].mxu0
        %v480 = vadd.f32 %v320, %v479
        %481 = vmatprep.mubr.f32.mxu0 0.0
        %482 = vmatmul.mubr.f32.gmra.mrb[0].mxu0 %v332
        %v483 = vpop.f32.mrb[0].mxu0
        %v484 = vadd.f32 %v325, %v483
        %v485 = vpop.f32.mrb[0].mxu0
        %v486 = vadd.f32 %v325, %v485
        %487 = vdwg.mxu0
        %488 = vst [vmem:[#allocation5] sm:$0xff] %v401
        %489 = vst [vmem:[#allocation5 + $0x8] sm:$0xff] %v403
        %490 = vst [vmem:[#allocation5 + $0x10] sm:$0xff] %v478
        %491 = vst [vmem:[#allocation5 + $0x18] sm:$0xff] %v480
        %492 = vst [vmem:[#allocation5 + $0x20] sm:$0xff] %v407
        %493 = vst [vmem:[#allocation5 + $0x28] sm:$0xff] %v409
        %494 = vst [vmem:[#allocation5 + $0x30] sm:$0xff] %v484
        %495 = vst [vmem:[#allocation5 + $0x38] sm:$0xff] %v486
        %v496 = vld [vmem:[#allocation3] sm:$0xff]
        %v497 = vld [vmem:[#allocation3 + $0x8] sm:$0xff]
        %v498 = vld [vmem:[#allocation5] sm:$0xff]
        %v499 = vld [vmem:[#allocation5 + $0x20] sm:$0xff]
        %v500 = vsub.f32 %v498, %v496
        %v501 = vsub.f32 %v499, %v497
        %v502 = vmul.f32 %v500, 0.5
        %v503 = vmul.f32 %v501, 0.5
        %v504 = vadd.f32 %v496, %v502
        %v505 = vadd.f32 %v497, %v503
        %vm506 = vcmp.ge.f32.partialorder %v504, 1.0
        %vm507 = vcmp.ge.f32.partialorder %v505, 1.0
        %v508 = vsel %vm506, 1, 0
        %v509 = vsel %vm507, 1, 0
        %v510 = vcvt.s32.f32 %v508
        %v511 = vcvt.s32.f32 %v509
        %512 = vst [vmem:[#allocation6] sm:$0xff] %v510
        %513 = vst [vmem:[#allocation6 + $0x20] sm:$0xff] %v511
        %v514 = vsel %vm506, 0.0, %v504
        %v515 = vsel %vm507, 0.0, %v505
        %516 = vst [vmem:[#allocation3] sm:$0xff] %v514
        %517 = vst [vmem:[#allocation3 + $0x8] sm:$0xff] %v515
        %v518 = vld [vmem:[#allocation3] sm:$0xff]
        %v519 = vld [vmem:[#allocation3 + $0x8] sm:$0xff]
        %v520 = vld [vmem:[#allocation5 + $0x8] sm:$0xff]
        %v521 = vld [vmem:[#allocation5 + $0x28] sm:$0xff]
        %v522 = vsub.f32 %v520, %v518
        %v523 = vsub.f32 %v521, %v519
        %v524 = vmul.f32 %v522, 0.5
        %v525 = vmul.f32 %v523, 0.5
        %v526 = vadd.f32 %v518, %v524
        %v527 = vadd.f32 %v519, %v525
        %vm528 = vcmp.ge.f32.partialorder %v526, 1.0
        %vm529 = vcmp.ge.f32.partialorder %v527, 1.0
        %v530 = vsel %vm528, 1, 0
        %v531 = vsel %vm529, 1, 0
        %v532 = vcvt.s32.f32 %v530
        %v533 = vcvt.s32.f32 %v531
        %534 = vst [vmem:[#allocation6 + $0x8] sm:$0xff] %v532
        %535 = vst [vmem:[#allocation6 + $0x28] sm:$0xff] %v533
        %v536 = vsel %vm528, 0.0, %v526
        %v537 = vsel %vm529, 0.0, %v527
        %538 = vst [vmem:[#allocation3] sm:$0xff] %v536
        %539 = vst [vmem:[#allocation3 + $0x8] sm:$0xff] %v537
        %v540 = vld [vmem:[#allocation3] sm:$0xff]
        %v541 = vld [vmem:[#allocation3 + $0x8] sm:$0xff]
        %v542 = vld [vmem:[#allocation5 + $0x10] sm:$0xff]
        %v543 = vld [vmem:[#allocation5 + $0x30] sm:$0xff]
        %v544 = vsub.f32 %v542, %v540
        %v545 = vsub.f32 %v543, %v541
        %v546 = vmul.f32 %v544, 0.5
        %v547 = vmul.f32 %v545, 0.5
        %v548 = vadd.f32 %v540, %v546
        %v549 = vadd.f32 %v541, %v547
        %vm550 = vcmp.ge.f32.partialorder %v548, 1.0
        %vm551 = vcmp.ge.f32.partialorder %v549, 1.0
        %v552 = vsel %vm550, 1, 0
        %v553 = vsel %vm551, 1, 0
        %v554 = vcvt.s32.f32 %v552
        %v555 = vcvt.s32.f32 %v553
        %556 = vst [vmem:[#allocation6 + $0x10] sm:$0xff] %v554
        %557 = vst [vmem:[#allocation6 + $0x30] sm:$0xff] %v555
        %v558 = vsel %vm550, 0.0, %v548
        %v559 = vsel %vm551, 0.0, %v549
        %560 = vst [vmem:[#allocation3] sm:$0xff] %v558
        %561 = vst [vmem:[#allocation3 + $0x8] sm:$0xff] %v559
        %v562 = vld [vmem:[#allocation3] sm:$0xff]
        %v563 = vld [vmem:[#allocation3 + $0x8] sm:$0xff]
        %v564 = vld [vmem:[#allocation5 + $0x18] sm:$0xff]
        %v565 = vld [vmem:[#allocation5 + $0x38] sm:$0xff]
        %v566 = vsub.f32 %v564, %v562
        %v567 = vsub.f32 %v565, %v563
        %v568 = vmul.f32 %v566, 0.5
        %v569 = vmul.f32 %v567, 0.5
        %v570 = vadd.f32 %v562, %v568
        %v571 = vadd.f32 %v563, %v569
        %vm572 = vcmp.ge.f32.partialorder %v570, 1.0
        %vm573 = vcmp.ge.f32.partialorder %v571, 1.0
        %v574 = vsel %vm572, 1, 0
        %v575 = vsel %vm573, 1, 0
        %v576 = vcvt.s32.f32 %v574
        %v577 = vcvt.s32.f32 %v575
        %578 = vst [vmem:[#allocation6 + $0x18] sm:$0xff] %v576
        %579 = vst [vmem:[#allocation6 + $0x38] sm:$0xff] %v577
        %v580 = vsel %vm572, 0.0, %v570
        %v581 = vsel %vm573, 0.0, %v571
        %582 = vst [vmem:[#allocation3] sm:$0xff] %v580
        %583 = vst [vmem:[#allocation3 + $0x8] sm:$0xff] %v581
        %v584 = vld [vmem:[%s3] sm:$0xff]
        %v585 = vld [vmem:[#allocation6] sm:$0xff]
        %v586 = vld [vmem:[#allocation6 + $0x8] sm:$0xff]
        %v587 = vld [vmem:[#allocation6 + $0x10] sm:$0xff]
        %v588 = vld [vmem:[#allocation6 + $0x18] sm:$0xff]
        %v589 = vld [vmem:[#allocation6 + $0x20] sm:$0xff]
        %v590 = vld [vmem:[#allocation6 + $0x28] sm:$0xff]
        %v591 = vld [vmem:[#allocation6 + $0x30] sm:$0xff]
        %v592 = vld [vmem:[#allocation6 + $0x38] sm:$0xff]
        %v593 = vld [vmem:[%s4] sm:$0xff]
        %595 = vset.pattern.permute.xlu0 0
        %596 = vperm.xlu0 %595, %v593
        %v597 = vpop.permute.xlu0 %596
        %vm599 = vcmask 130048
        %v601 = vsel %vm599, %v584, 0
        %603 = vmatprep.subr.mxu0 %v586
        %604 = vmatpush1.msra.mxu0 %v585
        %605 = vmatprep.subr.mxu0 %v590
        %606 = vmatpush1.msra.mxu0 %v589
        %607 = vmatprep.subr.mxu0 0.0
        %608 = vmatpush1.msra.mxu0 0.0
        %609 = vmatprep.subr.mxu0 0.0
        %610 = vmatpush1.msra.mxu0 0.0
        %611 = vmatprep.subr.mxu0 0.0
        %612 = vmatpush1.msra.mxu0 0.0
        %613 = vmatprep.subr.mxu0 0.0
        %614 = vmatpush1.msra.mxu0 0.0
        %615 = vmatprep.subr.mxu0 0.0
        %616 = vmatpush1.msra.mxu0 0.0
        %617 = vmatprep.subr.mxu0 0.0
        %618 = vmatpush1.msra.mxu0 0.0
        %619 = vmatprep.subr.mxu0 0.0
        %620 = vmatpush1.msra.mxu0 0.0
        %621 = vmatprep.subr.mxu0 0.0
        %622 = vmatpush1.msra.mxu0 0.0
        %623 = vmatprep.subr.mxu0 0.0
        %624 = vmatpush1.msra.mxu0 0.0
        %625 = vmatprep.subr.mxu0 0.0
        %626 = vmatpush1.msra.mxu0 0.0
        %627 = vmatprep.subr.mxu0 0.0
        %628 = vmatpush1.msra.mxu0 0.0
        %629 = vmatprep.subr.mxu0 0.0
        %630 = vmatpush1.msra.mxu0 0.0
        %631 = vmatprep.subr.mxu0 0.0
        %632 = vmatpush1.msra.mxu0 0.0
        %633 = vmatprep.subr.mxu0 0.0
        %634 = vmatpush1.msra.mxu0 0.0
        %635 = vmatprep.subr.mxu0 0.0
        %636 = vmatpush1.msra.mxu0 0.0
        %637 = vmatprep.subr.mxu0 0.0
        %638 = vmatpush1.msra.mxu0 0.0
        %639 = vmatprep.subr.mxu0 0.0
        %640 = vmatpush1.msra.mxu0 0.0
        %641 = vmatprep.subr.mxu0 0.0
        %642 = vmatpush1.msra.mxu0 0.0
        %643 = vmatprep.subr.mxu0 0.0
        %644 = vmatpush1.msra.mxu0 0.0
        %645 = vmatprep.subr.mxu0 0.0
        %646 = vmatpush1.msra.mxu0 0.0
        %647 = vmatprep.subr.mxu0 0.0
        %648 = vmatpush1.msra.mxu0 0.0
        %649 = vmatprep.subr.mxu0 0.0
        %650 = vmatpush1.msra.mxu0 0.0
        %651 = vmatprep.subr.mxu0 0.0
        %652 = vmatpush1.msra.mxu0 0.0
        %653 = vmatprep.subr.mxu0 0.0
        %654 = vmatpush1.msra.mxu0 0.0
        %655 = vmatprep.subr.mxu0 0.0
        %656 = vmatpush1.msra.mxu0 0.0
        %657 = vmatprep.subr.mxu0 0.0
        %658 = vmatpush1.msra.mxu0 0.0
        %659 = vmatprep.subr.mxu0 0.0
        %660 = vmatpush1.msra.mxu0 0.0
        %661 = vmatprep.subr.mxu0 0.0
        %662 = vmatpush1.msra.mxu0 0.0
        %663 = vmatprep.subr.mxu0 0.0
        %664 = vmatpush1.msra.mxu0 0.0
        %665 = vmatprep.subr.mxu0 0.0
        %666 = vmatpush1.msra.mxu0 0.0
        %667 = vmatprep.mubr.f32.mxu0 0.0
        %668 = vmatmul.mubr.f32.gmra.mrb[0].mxu0 %v601
        %v669 = vpop.f32.mrb[0].mxu0
        %v670 = vadd.f32 %v597, %v669
        %v671 = vpop.f32.mrb[0].mxu0
        %v672 = vadd.f32 %v597, %v671
        %673 = vdwg.mxu0
        %674 = vmatprep.subr.mxu0 %v588
        %675 = vmatpush1.msra.mxu0 %v587
        %676 = vmatprep.subr.mxu0 %v592
        %677 = vmatpush1.msra.mxu0 %v591
        %678 = vmatprep.subr.mxu0 0.0
        %679 = vmatpush1.msra.mxu0 0.0
        %680 = vmatprep.subr.mxu0 0.0
        %681 = vmatpush1.msra.mxu0 0.0
        %682 = vmatprep.subr.mxu0 0.0
        %683 = vmatpush1.msra.mxu0 0.0
        %684 = vmatprep.subr.mxu0 0.0
        %685 = vmatpush1.msra.mxu0 0.0
        %686 = vmatprep.subr.mxu0 0.0
        %687 = vmatpush1.msra.mxu0 0.0
        %688 = vmatprep.subr.mxu0 0.0
        %689 = vmatpush1.msra.mxu0 0.0
        %690 = vmatprep.subr.mxu0 0.0
        %691 = vmatpush1.msra.mxu0 0.0
        %692 = vmatprep.subr.mxu0 0.0
        %693 = vmatpush1.msra.mxu0 0.0
        %694 = vmatprep.subr.mxu0 0.0
        %695 = vmatpush1.msra.mxu0 0.0
        %696 = vmatprep.subr.mxu0 0.0
        %697 = vmatpush1.msra.mxu0 0.0
        %698 = vmatprep.subr.mxu0 0.0
        %699 = vmatpush1.msra.mxu0 0.0
        %700 = vmatprep.subr.mxu0 0.0
        %701 = vmatpush1.msra.mxu0 0.0
        %702 = vmatprep.subr.mxu0 0.0
        %703 = vmatpush1.msra.mxu0 0.0
        %704 = vmatprep.subr.mxu0 0.0
        %705 = vmatpush1.msra.mxu0 0.0
        %706 = vmatprep.subr.mxu0 0.0
        %707 = vmatpush1.msra.mxu0 0.0
        %708 = vmatprep.subr.mxu0 0.0
        %709 = vmatpush1.msra.mxu0 0.0
        %710 = vmatprep.subr.mxu0 0.0
        %711 = vmatpush1.msra.mxu0 0.0
        %712 = vmatprep.subr.mxu0 0.0
        %713 = vmatpush1.msra.mxu0 0.0
        %714 = vmatprep.subr.mxu0 0.0
        %715 = vmatpush1.msra.mxu0 0.0
        %716 = vmatprep.subr.mxu0 0.0
        %717 = vmatpush1.msra.mxu0 0.0
        %718 = vmatprep.subr.mxu0 0.0
        %719 = vmatpush1.msra.mxu0 0.0
        %720 = vmatprep.subr.mxu0 0.0
        %721 = vmatpush1.msra.mxu0 0.0
        %722 = vmatprep.subr.mxu0 0.0
        %723 = vmatpush1.msra.mxu0 0.0
        %724 = vmatprep.subr.mxu0 0.0
        %725 = vmatpush1.msra.mxu0 0.0
        %726 = vmatprep.subr.mxu0 0.0
        %727 = vmatpush1.msra.mxu0 0.0
        %728 = vmatprep.subr.mxu0 0.0
        %729 = vmatpush1.msra.mxu0 0.0
        %730 = vmatprep.subr.mxu0 0.0
        %731 = vmatpush1.msra.mxu0 0.0
        %732 = vmatprep.subr.mxu0 0.0
        %733 = vmatpush1.msra.mxu0 0.0
        %734 = vmatprep.subr.mxu0 0.0
        %735 = vmatpush1.msra.mxu0 0.0
        %736 = vmatprep.subr.mxu0 0.0
        %737 = vmatpush1.msra.mxu0 0.0
        %738 = vmatprep.mubr.f32.mxu0 0.0
        %739 = vmatmul.mubr.f32.gmra.mrb[0].mxu0 %v601
        %v740 = vpop.f32.mrb[0].mxu0
        %v741 = vadd.f32 %v597, %v740
        %v742 = vpop.f32.mrb[0].mxu0
        %v743 = vadd.f32 %v597, %v742
        %744 = vdwg.mxu0
        %745 = vst [vmem:[%s258] sm:$0xff] %v670
        %s746 = scalar_lea.vmem %s258, 8 [#allocation10]
        %747 = vst [vmem:[%s746] sm:$0xff] %v672
        %s748 = scalar_lea.vmem %s258, 16 [#allocation10]
        %749 = vst [vmem:[%s748] sm:$0xff] %v741
        %s750 = scalar_lea.vmem %s258, 24 [#allocation10]
        %751 = vst [vmem:[%s750] sm:$0xff] %v743
        %s752 = sand.u32 %s156, 1
        %s753 = scalar_lea.sflag [#allocation9], %s752
        %s754 = sand.u32 %s156, 1
        %s755 = smul.addr %s754, 32
        %s756 = scalar_lea.vmem [#allocation10], %s755
        // Predicated region
        $region45: #{tpu_custom_call.1} parent=39 // pred_check
          %p757 = pneg %p166
        $region46: #{tpu_custom_call.1} parent=39 // pred_check_branch
          %759 = sbr.rel (%p757) target = $region48
        $region47: #{tpu_custom_call.1} parent=39 // pred_region
          %s761 = ssub.s32 512, 512
          %762 = vsyncadd %s753, %s761
          %s763 = sadd.s32 %s27, %s26
          %s764 = smul.addr %s763, 128
          %s765 = scalar_lea.hbm %s5, %s764
          %s766 = sshll.u32 %s756, 4
          %s767 = int_to_ptr.vmem [resolvable:$true] %s766
          %772 = dma.vmem_to_hbm [thread:$0]  %s767, 512, %s765, %s753, 128, 256, 8
        $region48: #{tpu_custom_call.1} parent=39 // pred_fallthru
          _
      $region40: #{tpu_custom_call.1} parent=5 // pred_fallthru
        _
      %p773 = scmp.le.s32.totalorder 2, %s17
      // Predicated region
      $region49: #{tpu_custom_call.1} parent=5 // pred_check
        %p774 = pneg %p773
      $region50: #{tpu_custom_call.1} parent=5 // pred_check_branch
        %776 = sbr.rel (%p774) target = $region52
      $region51: #{tpu_custom_call.1} parent=5 // pred_region
        %s777 = ssub.s32 %s17, 2
        // Predicated region
        $region53: #{tpu_custom_call.1} parent=51 // pred_check
          %p778 = pneg %p172
        $region54: #{tpu_custom_call.1} parent=51 // pred_check_branch
          %780 = sbr.rel (%p778) target = $region56
        $region55: #{tpu_custom_call.1} parent=51 // pred_region
          %s781 = sand.u32 %s157, 1
          %s782 = scalar_lea.sflag [#allocation9], %s781
          %s783 = sand.u32 %s157, 1
          %s784 = smul.addr %s783, 32
          %s785 = scalar_lea.vmem [#allocation10], %s784
          %786 = dma.done %s782, 512
        $region56: #{tpu_custom_call.1} parent=51 // pred_fallthru
          _
      $region52: #{tpu_custom_call.1} parent=5 // pred_fallthru
        _
    $region6: #{tpu_custom_call.1} parent=1 // loop_footer
      %s21 = sadd.s32 1, %s17
    $region7: #{tpu_custom_call.1} parent=1 // loop_footer_branch
      %16 = sbr.rel target = $region3
    $region8: #{tpu_custom_call.1} parent=1 // loop_exit
      _
    %787 = vsyncpa [#allocation8], 1
    %s788 = scalar_lea.sflag [#allocation8], 1
    %789 = vsyncpa %s788, 1
    %790 = vsyncpa [#allocation9], 1
    %s791 = scalar_lea.sflag [#allocation9], 1
    %792 = vsyncpa %s791, 1

</llo_original>
